<compile_context>
chip_gen: v5e
topology: v5e:2x2
jax: 0.10.0
libtpu: 0.0.40
codegen_flags: <defaults>
</compile_context>

<pallas_src>
import math

import jax
import jax.numpy as jnp
from jax.experimental import pallas as pl
from jax.experimental.pallas import tpu as pltpu


# Below this time length the lane axis is under-utilized -> pure-XLA fallback.
_MIN_LANE_T = 128
# Per-buffer VMEM budget: 2 input + 2 output double-buffers of this size stay
# well under the default scoped VMEM on v5e (16 MiB) and v6e/v7x (32 MiB), and
# far under v7x's 64 MiB physical VMEM.
_PER_BUFFER_BYTES = 2 * 1024 * 1024
# ~512-row tiles already reach ~85% of the HBM roofline; 1024 gets ~86% and
# keeps per-grid-step overhead (~0.35 us) negligible without VMEM pressure.
_MAX_ROW_TILE = 1024


def _time_shift_kernel(s_ref, x_ref, o_ref):
    # s_ref: (1,) int32 in SMEM — dynamic roll amount, already reduced mod T.
    # x_ref / o_ref: (TR, T) VMEM tiles; time is the lane axis.
    o_ref[...] = pltpu.roll(x_ref[...], shift=s_ref[0], axis=1)


def _choose_row_tile(R, T, itemsize):
    """Largest sublane-aligned row tile that fits the per-buffer VMEM budget."""
    # Sublane packing: 8 rows for 32-bit, 16 for bf16, 32 for int8.
    sub = 8 * max(1, 4 // itemsize)
    rows_by_budget = max(sub, _PER_BUFFER_BYTES // (T * itemsize))
    r_pad = -(-R // sub) * sub
    tr = min(rows_by_budget, _MAX_ROW_TILE, r_pad)
    return max(sub, (tr // sub) * sub)


@jax.jit
def time_shift_roll(spec, deltat):
    """Equivalent of torch.roll(spec, shifts=deltat, dims=-1); deltat may be traced."""
    orig_shape = spec.shape
    T = orig_shape[-1]
    R = int(math.prod(orig_shape[:-1]))

    # torch.roll / jnp.roll reduce the shift modulo the axis length; do the
    # same so the XLU rotate only ever sees 0 <= s < T.
    s = (jnp.asarray(deltat, dtype=jnp.int32) % jnp.int32(T)).reshape((1,))

    # Lane-sparse guard: tiny time axes are faster through XLA.
    if T < _MIN_LANE_T:
        return jnp.roll(spec, s[0], axis=-1)

    x2 = spec.reshape(R, T)
    itemsize = jnp.dtype(spec.dtype).itemsize
    TR = _choose_row_tile(R, T, itemsize)

    out = pl.pallas_call(
        _time_shift_kernel,
        out_shape=jax.ShapeDtypeStruct((R, T), spec.dtype),
        grid=(pl.cdiv(R, TR),),
        in_specs=[
            pl.BlockSpec(memory_space=pltpu.MemorySpace.SMEM),  # the shift scalar
            pl.BlockSpec((TR, T), lambda i: (i, 0)),
        ],
        out_specs=pl.BlockSpec((TR, T), lambda i: (i, 0)),
        compiler_params=pltpu.CompilerParams(
            # Row tiles are independent: lets v7x shard them across both TCs.
            dimension_semantics=("parallel",),
        ),
        cost_estimate=pl.CostEstimate(
            flops=0,
            transcendentals=0,
            bytes_accessed=2 * R * T * itemsize,
        ),
    )(s, x2)
    return out.reshape(orig_shape)


class TimeShift:
    """Pallas/JAX port of the PyTorch TimeShift module."""

    def __init__(self, Tshift):
        self.Tshift = Tshift

    def __call__(self, spec, key):
        # Mirrors deltat = int(np.random.uniform(0.0, Tshift)) but stays traced
        # (no host sync). Rolling by 0 is the identity, so the torch early
        # return for deltat == 0 is covered by always rolling.
        u = jax.random.uniform(key, (), minval=0.0, maxval=float(self.Tshift))
        deltat = jnp.floor(u).astype(jnp.int32)
        return time_shift_roll(spec, deltat)


if __name__ == "__main__":
    key = jax.random.PRNGKey(0)
    k_data, k_big, k_small, k_shift = jax.random.split(key, 4)

    # Lane-dense spectrogram-like input: time axis fills the 128 lanes.
    B, C, F, T = 2, 4, 16, 128
    spec = jax.random.normal(k_data, (B, C, F, T), dtype=jnp.float32)
    deltat = 37
    out = jax.block_until_ready(time_shift_roll(spec, deltat))
    ref = jnp.roll(spec, deltat, axis=-1)
    assert out.shape == spec.shape and out.dtype == spec.dtype
    assert jnp.array_equal(out, ref), "Pallas roll mismatch vs jnp.roll"

    # Larger row count (R = 1280 > 1024-row tile) -> exercises the tiled /
    # pipelined path (grid > 1, including a partial trailing row block).
    spec_big = jax.random.normal(k_big, (2, 8, 80, 128), dtype=jnp.float32)
    out_big = jax.block_until_ready(time_shift_roll(spec_big, 100))
    assert jnp.array_equal(out_big, jnp.roll(spec_big, 100, axis=-1))

    # Small-T input takes the XLA fallback path (lane-sparse guard).
    spec_small = jax.random.normal(k_small, (2, 4, 16, 16), dtype=jnp.float32)
    out_small = jax.block_until_ready(time_shift_roll(spec_small, 5))
    assert jnp.array_equal(out_small, jnp.roll(spec_small, 5, axis=-1))

    # Shift of 0 (and a shift >= T, which reduces mod T) are identities /
    # wrap correctly.
    out_zero = jax.block_until_ready(time_shift_roll(spec, 0))
    assert jnp.array_equal(out_zero, spec)
    out_wrap = jax.block_until_ready(time_shift_roll(spec, T + 3))
    assert jnp.array_equal(out_wrap, jnp.roll(spec, 3, axis=-1))

    # Module-style call with a traced random shift (no host round-trip).
    ts = TimeShift(Tshift=64)
    out_mod = jax.block_until_ready(ts(spec, k_shift))
    u = jax.random.uniform(k_shift, (), minval=0.0, maxval=64.0)
    deltat_mod = int(jnp.floor(u))
    assert jnp.array_equal(out_mod, jnp.roll(spec, deltat_mod, axis=-1))

    print("KERNEL_OK")
</pallas_src>

<mosaic_0001>
module attributes {stable_mosaic.version = 11 : i64} {
  func.func @_time_shift_kernel(%arg0: i32, %arg1: memref<1xi32, #tpu.memory_space<smem>>, %arg2: memref<128x128xf32, #tpu.memory_space<vmem>>, %arg3: memref<128x128xf32, #tpu.memory_space<vmem>>) attributes {dimension_semantics = [#tpu.dimension_semantics<parallel>], iteration_bounds = array<i64: 1>, scalar_prefetch = 0 : i64, scratch_operands = 0 : i64, tpu.core_type = #tpu.core_type<tc>, window_params = [{transform_indices = @transform_0, window_bounds = array<i64: 1>}, {transform_indices = @transform_1, window_bounds = array<i64: 128, 128>}, {transform_indices = @transform_2, window_bounds = array<i64: 128, 128>}]} {
    %c0 = arith.constant 0 : index
    %c0_0 = arith.constant 0 : index
    %0 = vector.load %arg2[%c0, %c0_0] : memref<128x128xf32, #tpu.memory_space<vmem>>, vector<128x128xf32>
    %c0_1 = arith.constant 0 : index
    %1 = memref.load %arg1[%c0_1] : memref<1xi32, #tpu.memory_space<smem>>
    %2 = tpu.dynamic_rotate %0 by %1 dim 1 : vector<128x128xf32>, i32 -> vector<128x128xf32>
    %c0_2 = arith.constant 0 : index
    %c0_3 = arith.constant 0 : index
    %3 = vector.load %arg3[%c0_2, %c0_3] : memref<128x128xf32, #tpu.memory_space<vmem>>, vector<128x128xf32>
    tpu.vector_store %arg3[%c0_2, %c0_3], %2 {strides = array<i32>} : memref<128x128xf32, #tpu.memory_space<vmem>>, vector<128x128xf32>,
    return
  }
  func.func @transform_0(%arg0: i32) -> i32 {
    %c0_i32 = arith.constant 0 : i32
    %c0_i32_0 = arith.constant 0 : i32
    return %c0_i32 : i32
  }
  func.func @transform_1(%arg0: i32) -> (i32, i32) {
    %c0_i32 = arith.constant 0 : i32
    %c0_i32_0 = arith.constant 0 : i32
    return %arg0, %c0_i32 : i32, i32
  }
  func.func @transform_2(%arg0: i32) -> (i32, i32) {
    %c0_i32 = arith.constant 0 : i32
    %c0_i32_0 = arith.constant 0 : i32
    return %arg0, %c0_i32 : i32, i32
  }
}

</mosaic_0001>

<llo_original>
// kernel: time_shift_roll.1
$region0: #{time_shift_roll.1}
  #allocation0 [shape = 'u32[]', space=smem, size = 0x4, offset = 0x4, fixed_abs, tag = 'smem constant byte address 0x4 - core index']
  #allocation1 [shape = 'u32[72,128]{1,0:T(1,128)}', space=vmem, size = 0x9000, scoped, tag = 'internal scratch']
  #allocation2 [shape = 's32[1]{0:T(128)S(6)}', space=smem, size = 0x200, scoped, tag = 'scoped memory for time_shift_roll.1']
  %s0 = inlined_call_operand.<no memory space> [shape: s32[1], index: 0, kind: input, shape index: {}]
  %s1 = inlined_call_operand.hbm [shape: f32[128,128], index: 1, kind: input, shape index: {}]
  %s2 = inlined_call_operand.hbm [shape: f32[128,128], index: 2, kind: output, shape index: {}]
  %s3 = sld [smem:[#allocation0]]
  $region22: #{time_shift_roll.1} parent=0
    _
  %s5 = ssub.s32 1, %s3
  %s6 = scalar_select 0, %s5, %s3
  %7 = sst [smem:[#allocation2]] %s0
  $region1: #{time_shift_roll.1} parent=0
    #allocation3 [shape = 'u8[65536]{0}', space=vmem, size = 0x10000, scoped, tag = 'input window, operand 1, single buffered']
    #allocation4 [shape = 's32[1]{0}', space=sflag, size = 0x4, scoped, tag = 'scoped memory for time_shift_roll.1']
    #allocation5 [shape = 's32[1]{0}', space=sflag, size = 0x4, scoped, tag = 'scoped memory for time_shift_roll.1']
    #allocation6 [shape = 'u8[65536]{0}', space=vmem, size = 0x10000, scoped, tag = 'output window, operand 0, single buffered']
    %8 = vsyncpa [#allocation4], 0
    %9 = vsyncpa [#allocation5], 0
    // Predicated region
    $region2: #{time_shift_roll.1} parent=1 // pred_check
      _
    $region3: #{time_shift_roll.1} parent=1 // pred_check_branch
      %11 = sbr.rel (0) target = $region5
    $region4: #{time_shift_roll.1} parent=1 // pred_region
      _
    $region5: #{time_shift_roll.1} parent=1 // pred_fallthru
      _
    // Predicated region
    $region6: #{time_shift_roll.1} parent=1 // pred_check
      _
    $region7: #{time_shift_roll.1} parent=1 // pred_check_branch
      %13 = sbr.rel (0) target = $region9
    $region8: #{time_shift_roll.1} parent=1 // pred_region
      %15 = vsyncadd [#allocation4], 0
      %s16 = sshll.u32 %s1, 4
      %s17 = int_to_ptr.hbm [resolvable:$true] %s16
      %s18 = sshll.u32 [#allocation3], 4
      %s19 = int_to_ptr.vmem [resolvable:$true] %s18
      %24 = dma.hbm_to_vmem [thread:$0]  %s17, 2048, %s19, [#allocation4], 128, 128, 8
    $region9: #{time_shift_roll.1} parent=1 // pred_fallthru
      _
    // Predicated region
    $region10: #{time_shift_roll.1} parent=1 // pred_check
      _
    $region11: #{time_shift_roll.1} parent=1 // pred_check_branch
      %26 = sbr.rel (0) target = $region13
    $region12: #{time_shift_roll.1} parent=1 // pred_region
      %28 = dma.done [#allocation4], 2048
    $region13: #{time_shift_roll.1} parent=1 // pred_fallthru
      _
    %v29 = vld [vmem:[#allocation3] sm:$0xff]
    %v30 = vld [vmem:[#allocation3 + $0x8] sm:$0xff]
    %v31 = vld [vmem:[#allocation3 + $0x10] sm:$0xff]
    %v32 = vld [vmem:[#allocation3 + $0x18] sm:$0xff]
    %v33 = vld [vmem:[#allocation3 + $0x20] sm:$0xff]
    %v34 = vld [vmem:[#allocation3 + $0x28] sm:$0xff]
    %v35 = vld [vmem:[#allocation3 + $0x30] sm:$0xff]
    %v36 = vld [vmem:[#allocation3 + $0x38] sm:$0xff]
    %v37 = vld [vmem:[#allocation3 + $0x40] sm:$0xff]
    %v38 = vld [vmem:[#allocation3 + $0x48] sm:$0xff]
    %v39 = vld [vmem:[#allocation3 + $0x50] sm:$0xff]
    %v40 = vld [vmem:[#allocation3 + $0x58] sm:$0xff]
    %v41 = vld [vmem:[#allocation3 + $0x60] sm:$0xff]
    %v42 = vld [vmem:[#allocation3 + $0x68] sm:$0xff]
    %v43 = vld [vmem:[#allocation3 + $0x70] sm:$0xff]
    %v44 = vld [vmem:[#allocation3 + $0x78] sm:$0xff]
    %s45 = sld [smem:[#allocation2]]
    %s46 = sand.u32 %s45, 127
    %s47 = sand.u32 %s46, 127
    %48 = vrot.lane.b32.xlu0 %v29, %s47
    %v49 = vpop.permute.xlu0 %48
    %50 = vrot.lane.b32.xlu0 %v30, %s47
    %v51 = vpop.permute.xlu0 %50
    %52 = vrot.lane.b32.xlu0 %v31, %s47
    %v53 = vpop.permute.xlu0 %52
    %54 = vrot.lane.b32.xlu0 %v32, %s47
    %v55 = vpop.permute.xlu0 %54
    %56 = vrot.lane.b32.xlu0 %v33, %s47
    %v57 = vpop.permute.xlu0 %56
    %58 = vrot.lane.b32.xlu0 %v34, %s47
    %v59 = vpop.permute.xlu0 %58
    %60 = vrot.lane.b32.xlu0 %v35, %s47
    %v61 = vpop.permute.xlu0 %60
    %62 = vrot.lane.b32.xlu0 %v36, %s47
    %v63 = vpop.permute.xlu0 %62
    %64 = vrot.lane.b32.xlu0 %v37, %s47
    %v65 = vpop.permute.xlu0 %64
    %66 = vrot.lane.b32.xlu0 %v38, %s47
    %v67 = vpop.permute.xlu0 %66
    %68 = vrot.lane.b32.xlu0 %v39, %s47
    %v69 = vpop.permute.xlu0 %68
    %70 = vrot.lane.b32.xlu0 %v40, %s47
    %v71 = vpop.permute.xlu0 %70
    %72 = vrot.lane.b32.xlu0 %v41, %s47
    %v73 = vpop.permute.xlu0 %72
    %74 = vrot.lane.b32.xlu0 %v42, %s47
    %v75 = vpop.permute.xlu0 %74
    %76 = vrot.lane.b32.xlu0 %v43, %s47
    %v77 = vpop.permute.xlu0 %76
    %78 = vrot.lane.b32.xlu0 %v44, %s47
    %v79 = vpop.permute.xlu0 %78
    %80 = vst [vmem:[#allocation6] sm:$0xff] %v49
    %81 = vst [vmem:[#allocation6 + $0x8] sm:$0xff] %v51
    %82 = vst [vmem:[#allocation6 + $0x10] sm:$0xff] %v53
    %83 = vst [vmem:[#allocation6 + $0x18] sm:$0xff] %v55
    %84 = vst [vmem:[#allocation6 + $0x20] sm:$0xff] %v57
    %85 = vst [vmem:[#allocation6 + $0x28] sm:$0xff] %v59
    %86 = vst [vmem:[#allocation6 + $0x30] sm:$0xff] %v61
    %87 = vst [vmem:[#allocation6 + $0x38] sm:$0xff] %v63
    %88 = vst [vmem:[#allocation6 + $0x40] sm:$0xff] %v65
    %89 = vst [vmem:[#allocation6 + $0x48] sm:$0xff] %v67
    %90 = vst [vmem:[#allocation6 + $0x50] sm:$0xff] %v69
    %91 = vst [vmem:[#allocation6 + $0x58] sm:$0xff] %v71
    %92 = vst [vmem:[#allocation6 + $0x60] sm:$0xff] %v73
    %93 = vst [vmem:[#allocation6 + $0x68] sm:$0xff] %v75
    %94 = vst [vmem:[#allocation6 + $0x70] sm:$0xff] %v77
    %95 = vst [vmem:[#allocation6 + $0x78] sm:$0xff] %v79
    // Predicated region
    $region14: #{time_shift_roll.1} parent=1 // pred_check
      _
    $region15: #{time_shift_roll.1} parent=1 // pred_check_branch
      %97 = sbr.rel (0) target = $region17
    $region16: #{time_shift_roll.1} parent=1 // pred_region
      %99 = vsyncadd [#allocation5], 0
      %s100 = sshll.u32 [#allocation6], 4
      %s101 = int_to_ptr.vmem [resolvable:$true] %s100
      %s102 = sshll.u32 %s2, 4
      %s103 = int_to_ptr.hbm [resolvable:$true] %s102
      %108 = dma.vmem_to_hbm [thread:$0]  %s101, 2048, %s103, [#allocation5], 128, 128, 8
    $region17: #{time_shift_roll.1} parent=1 // pred_fallthru
      _
    // Predicated region
    $region18: #{time_shift_roll.1} parent=1 // pred_check
      _
    $region19: #{time_shift_roll.1} parent=1 // pred_check_branch
      %110 = sbr.rel (0) target = $region21
    $region20: #{time_shift_roll.1} parent=1 // pred_region
      %112 = dma.done [#allocation5], 2048
    $region21: #{time_shift_roll.1} parent=1 // pred_fallthru
      _
    %113 = vsyncpa [#allocation4], 1
    %114 = vsyncpa [#allocation5], 1

</llo_original>
